<compile_context>
chip_gen: v6e
topology: v6e:2x2x1
jax: 0.10.0
libtpu: 0.0.40
codegen_flags: <defaults>
</compile_context>

<pallas_src>
import functools

import jax
import jax.numpy as jnp
from jax import lax
from jax.experimental import pallas as pl
from jax.experimental.pallas import tpu as pltpu


def _lstm_classifier_kernel(feature_dim, hidden_dim, class_size,
                            xc_ref, wslab_ref, oslab_ref, out_ref):
    F_, H, C = feature_dim, hidden_dim, class_size
    S = xc_ref.shape[0]

    # ---- unpack the packed operands with static slices (no runtime cost) ----
    xc = xc_ref[...]                          # (S, F+C)
    x = xc[:, :F_]                            # (S, F)
    cs = xc[:, F_:F_ + C]                     # (S, C)

    wx = wslab_ref[0:F_, :]                   # (F, 4H)  input->gate  (i,f,g,o)
    wh = wslab_ref[F_:F_ + H, :]              # (H, 4H)  hidden->gate
    b = wslab_ref[F_ + H:F_ + H + 1, :]       # (1, 4H)  b_ih + b_hh

    # ---- fused input projection: one MXU matmul for all gates & all steps ---
    # (S, 4H) = one (8,128) f32 vreg; kept as a value, never stored to VMEM.
    gates = jnp.dot(x, wx, preferred_element_type=jnp.float32) + b

    # ---- fully-unrolled recurrence (S is small and static) ------------------
    h = jnp.zeros((1, H), jnp.float32)
    c = jnp.zeros((1, H), jnp.float32)
    hs = []
    for t in range(S):
        # One fused recurrent matmul per step: (1, H) @ (H, 4H) -> (1, 4H).
        z = gates[t:t + 1, :] + jnp.dot(h, wh,
                                        preferred_element_type=jnp.float32)
        sig = jax.nn.sigmoid(z)               # one EUP pass serves i, f, o
        i = sig[:, 0 * H:1 * H]
        f = sig[:, 1 * H:2 * H]
        o = sig[:, 3 * H:4 * H]
        g = jnp.tanh(z[:, 2 * H:3 * H])
        c = f * c + i * g
        h = o * jnp.tanh(c)
        hs.append(h)                          # stays in vregs

    h_all = jnp.concatenate(hs, axis=0)       # (S, H)

    # ---- folded + merged output projection: a single MXU matmul -------------
    combined = jnp.concatenate([h_all, cs], axis=1)      # (S, H+C)
    w_out = oslab_ref[0:H + C, :]                        # (H+C, C)
    b_out = oslab_ref[H + C:H + C + 1, :]                # (1, C)
    logits = jnp.dot(combined, w_out,
                     preferred_element_type=jnp.float32) + b_out  # (S, C)

    # ---- numerically stable log-softmax over classes ------------------------
    m = jnp.max(logits, axis=1, keepdims=True)
    zc = logits - m
    out_ref[...] = zc - jnp.log(jnp.sum(jnp.exp(zc), axis=1, keepdims=True))


def lstm_classifier_forward(x, constraints, params):
    """x: (S, F) f32, constraints: (S, C) f32. Returns (S, C) log-probs."""
    S, F_ = x.shape
    C = constraints.shape[1]
    W_ih, W_hh, b_ih, b_hh, W_h2t, b_h2t, W_c2c, b_c2c = params
    H = W_hh.shape[1]
    f32 = jnp.float32

    # PyTorch LSTM packs gates as rows [i; f; g; o] of the (4H, *) matrices;
    # transposing keeps that gate order along the lane (last) axis.
    wx = W_ih.T.astype(f32)                               # (F, 4H)
    wh = W_hh.T.astype(f32)                               # (H, 4H)
    b = (b_ih + b_hh).reshape(1, 4 * H).astype(f32)       # (1, 4H)
    wslab = jnp.concatenate([wx, wh, b], axis=0)          # (F+H+1, 4H)

    # Fold hidden2tag into class2class on the class_space half of the concat:
    #   (h @ Wh2t^T + b_h2t) @ Wa + cs @ Wb + b_c2c
    #    = h @ (Wh2t^T @ Wa) + cs @ Wb + (b_h2t @ Wa + b_c2c)
    wc2c_a = W_c2c[:, :C].T                               # (C, C)
    wc2c_b = W_c2c[:, C:].T                               # (C, C)
    w_comb = (W_h2t.T @ wc2c_a).astype(f32)               # (H, C)
    b_comb = (b_h2t @ wc2c_a + b_c2c).reshape(1, C).astype(f32)
    oslab = jnp.concatenate([w_comb, wc2c_b.astype(f32), b_comb],
                            axis=0)                       # (H+C+1, C)

    xc = jnp.concatenate([x.astype(f32), constraints.astype(f32)],
                         axis=1)                          # (S, F+C)

    kernel = functools.partial(_lstm_classifier_kernel, F_, H, C)
    vmem_spec = pl.BlockSpec(memory_space=pltpu.MemorySpace.VMEM)
    return pl.pallas_call(
        kernel,
        out_shape=jax.ShapeDtypeStruct((S, C), jnp.float32),
        in_specs=[vmem_spec, vmem_spec, vmem_spec],
        out_specs=vmem_spec,
    )(xc, wslab, oslab)


def _reference_forward(x, constraints, params):
    """Pure-JAX reference with PyTorch LSTM semantics (batch=1)."""
    W_ih, W_hh, b_ih, b_hh, W_h2t, b_h2t, W_c2c, b_c2c = params
    H = W_hh.shape[1]

    def step(carry, xt):
        h, c = carry
        gates = xt @ W_ih.T + b_ih + h @ W_hh.T + b_hh
        i = jax.nn.sigmoid(gates[0 * H:1 * H])
        f = jax.nn.sigmoid(gates[1 * H:2 * H])
        g = jnp.tanh(gates[2 * H:3 * H])
        o = jax.nn.sigmoid(gates[3 * H:4 * H])
        c_new = f * c + i * g
        h_new = o * jnp.tanh(c_new)
        return (h_new, c_new), h_new

    h0 = jnp.zeros((H,), jnp.float32)
    (_, _), hs = lax.scan(step, (h0, h0), x)
    class_space = hs @ W_h2t.T + b_h2t
    combined = jnp.concatenate([class_space, constraints], axis=1)
    logits = combined @ W_c2c.T + b_c2c
    return jax.nn.log_softmax(logits, axis=1)


if __name__ == "__main__":
    SEQ, FEAT, HID, CLS = 8, 16, 32, 8

    key = jax.random.PRNGKey(0)
    ks = jax.random.split(key, 10)

    # Deterministic synthetic parameters (shapes match nn.LSTM / nn.Linear).
    scale = 0.1
    W_ih = scale * jax.random.normal(ks[0], (4 * HID, FEAT), jnp.float32)
    W_hh = scale * jax.random.normal(ks[1], (4 * HID, HID), jnp.float32)
    b_ih = scale * jax.random.normal(ks[2], (4 * HID,), jnp.float32)
    b_hh = scale * jax.random.normal(ks[3], (4 * HID,), jnp.float32)
    W_h2t = scale * jax.random.normal(ks[4], (CLS, HID), jnp.float32)
    b_h2t = scale * jax.random.normal(ks[5], (CLS,), jnp.float32)
    W_c2c = scale * jax.random.normal(ks[6], (CLS, 2 * CLS), jnp.float32)
    b_c2c = scale * jax.random.normal(ks[7], (CLS,), jnp.float32)
    params = (W_ih, W_hh, b_ih, b_hh, W_h2t, b_h2t, W_c2c, b_c2c)

    surgeme_segment = jax.random.normal(ks[8], (SEQ, FEAT), jnp.float32)
    constraints_score = jax.random.normal(ks[9], (SEQ, CLS), jnp.float32)

    out = lstm_classifier_forward(surgeme_segment, constraints_score, params)
    out = jax.block_until_ready(out)

    ref = jax.block_until_ready(
        _reference_forward(surgeme_segment, constraints_score, params))

    assert out.shape == (SEQ, CLS)
    assert jnp.allclose(out, ref, atol=1e-5, rtol=1e-5), "mismatch vs reference"
    print("KERNEL_OK")
</pallas_src>

<mosaic_0001>
module attributes {stable_mosaic.version = 11 : i64} {
  func.func @_lstm_classifier_kernel(%arg0: memref<8x24xf32, #tpu.memory_space<vmem>>, %arg1: memref<49x128xf32, #tpu.memory_space<vmem>>, %arg2: memref<41x8xf32, #tpu.memory_space<vmem>>, %arg3: memref<8x8xf32, #tpu.memory_space<vmem>>) attributes {dimension_semantics = [], scalar_prefetch = 0 : i64, scratch_operands = 0 : i64, tpu.core_type = #tpu.core_type<tc>} {
    %c0 = arith.constant 0 : index
    %c0_0 = arith.constant 0 : index
    %0 = vector.load %arg0[%c0, %c0_0] : memref<8x24xf32, #tpu.memory_space<vmem>>, vector<8x24xf32>
    %1 = vector.extract_strided_slice %0 {offsets = [0, 0], sizes = [8, 16], strides = [1, 1]} : vector<8x24xf32> to vector<8x16xf32>
    %2 = vector.extract_strided_slice %0 {offsets = [0, 16], sizes = [8, 8], strides = [1, 1]} : vector<8x24xf32> to vector<8x8xf32>
    %c0_1 = arith.constant 0 : index
    %c0_2 = arith.constant 0 : index
    %3 = vector.load %arg1[%c0_1, %c0_2] : memref<49x128xf32, #tpu.memory_space<vmem>>, vector<16x128xf32>
    %c16 = arith.constant 16 : index
    %c0_3 = arith.constant 0 : index
    %4 = vector.load %arg1[%c16, %c0_3] : memref<49x128xf32, #tpu.memory_space<vmem>>, vector<32x128xf32>
    %c48 = arith.constant 48 : index
    %c0_4 = arith.constant 0 : index
    %5 = vector.load %arg1[%c48, %c0_4] : memref<49x128xf32, #tpu.memory_space<vmem>>, vector<1x128xf32>
    %cst = arith.constant dense<0.000000e+00> : vector<8x128xf32>
    %6 = tpu.matmul %1, %3, %cst {dimension_numbers = #tpu.dot_dimension_numbers<[1], [0], [0], [1], [0, 0, 1, 1], [], []>} : vector<8x16xf32>, vector<16x128xf32>, vector<8x128xf32> -> vector<8x128xf32>
    %7 = vector.broadcast %5 : vector<1x128xf32> to vector<8x128xf32>
    %8 = arith.addf %6, %7 : vector<8x128xf32>
    %cst_5 = arith.constant 0.000000e+00 : f32
    %9 = vector.broadcast %cst_5 : f32 to vector<1x32xf32>
    %cst_6 = arith.constant 0.000000e+00 : f32
    %10 = vector.broadcast %cst_6 : f32 to vector<1x32xf32>
    %11 = vector.extract_strided_slice %8 {offsets = [0, 0], sizes = [1, 128], strides = [1, 1]} : vector<8x128xf32> to vector<1x128xf32>
    %cst_7 = arith.constant dense<0.000000e+00> : vector<1x128xf32>
    %12 = tpu.matmul %9, %4, %cst_7 {dimension_numbers = #tpu.dot_dimension_numbers<[1], [0], [0], [1], [0, 0, 1, 1], [], []>} : vector<1x32xf32>, vector<32x128xf32>, vector<1x128xf32> -> vector<1x128xf32>
    %13 = arith.addf %11, %12 : vector<1x128xf32>
    %14 = arith.negf %13 : vector<1x128xf32>
    %15 = math.exp %14 : vector<1x128xf32>
    %cst_8 = arith.constant 1.000000e+00 : f32
    %16 = vector.broadcast %cst_8 : f32 to vector<1x128xf32>
    %17 = arith.addf %16, %15 : vector<1x128xf32>
    %18 = arith.divf %16, %17 : vector<1x128xf32>
    %19 = vector.extract_strided_slice %18 {offsets = [0, 0], sizes = [1, 32], strides = [1, 1]} : vector<1x128xf32> to vector<1x32xf32>
    %20 = vector.extract_strided_slice %18 {offsets = [0, 32], sizes = [1, 32], strides = [1, 1]} : vector<1x128xf32> to vector<1x32xf32>
    %21 = vector.extract_strided_slice %18 {offsets = [0, 96], sizes = [1, 32], strides = [1, 1]} : vector<1x128xf32> to vector<1x32xf32>
    %22 = vector.extract_strided_slice %13 {offsets = [0, 64], sizes = [1, 32], strides = [1, 1]} : vector<1x128xf32> to vector<1x32xf32>
    %23 = math.tanh %22 : vector<1x32xf32>
    %24 = arith.mulf %20, %10 : vector<1x32xf32>
    %25 = arith.mulf %19, %23 : vector<1x32xf32>
    %26 = arith.addf %24, %25 : vector<1x32xf32>
    %27 = math.tanh %26 : vector<1x32xf32>
    %28 = arith.mulf %21, %27 : vector<1x32xf32>
    %29 = vector.extract_strided_slice %8 {offsets = [1, 0], sizes = [1, 128], strides = [1, 1]} : vector<8x128xf32> to vector<1x128xf32>
    %cst_9 = arith.constant dense<0.000000e+00> : vector<1x128xf32>
    %30 = tpu.matmul %28, %4, %cst_9 {dimension_numbers = #tpu.dot_dimension_numbers<[1], [0], [0], [1], [0, 0, 1, 1], [], []>} : vector<1x32xf32>, vector<32x128xf32>, vector<1x128xf32> -> vector<1x128xf32>
    %31 = arith.addf %29, %30 : vector<1x128xf32>
    %32 = arith.negf %31 : vector<1x128xf32>
    %33 = math.exp %32 : vector<1x128xf32>
    %cst_10 = arith.constant 1.000000e+00 : f32
    %34 = vector.broadcast %cst_10 : f32 to vector<1x128xf32>
    %35 = arith.addf %34, %33 : vector<1x128xf32>
    %36 = arith.divf %34, %35 : vector<1x128xf32>
    %37 = vector.extract_strided_slice %36 {offsets = [0, 0], sizes = [1, 32], strides = [1, 1]} : vector<1x128xf32> to vector<1x32xf32>
    %38 = vector.extract_strided_slice %36 {offsets = [0, 32], sizes = [1, 32], strides = [1, 1]} : vector<1x128xf32> to vector<1x32xf32>
    %39 = vector.extract_strided_slice %36 {offsets = [0, 96], sizes = [1, 32], strides = [1, 1]} : vector<1x128xf32> to vector<1x32xf32>
    %40 = vector.extract_strided_slice %31 {offsets = [0, 64], sizes = [1, 32], strides = [1, 1]} : vector<1x128xf32> to vector<1x32xf32>
    %41 = math.tanh %40 : vector<1x32xf32>
    %42 = arith.mulf %38, %26 : vector<1x32xf32>
    %43 = arith.mulf %37, %41 : vector<1x32xf32>
    %44 = arith.addf %42, %43 : vector<1x32xf32>
    %45 = math.tanh %44 : vector<1x32xf32>
    %46 = arith.mulf %39, %45 : vector<1x32xf32>
    %47 = vector.extract_strided_slice %8 {offsets = [2, 0], sizes = [1, 128], strides = [1, 1]} : vector<8x128xf32> to vector<1x128xf32>
    %cst_11 = arith.constant dense<0.000000e+00> : vector<1x128xf32>
    %48 = tpu.matmul %46, %4, %cst_11 {dimension_numbers = #tpu.dot_dimension_numbers<[1], [0], [0], [1], [0, 0, 1, 1], [], []>} : vector<1x32xf32>, vector<32x128xf32>, vector<1x128xf32> -> vector<1x128xf32>
    %49 = arith.addf %47, %48 : vector<1x128xf32>
    %50 = arith.negf %49 : vector<1x128xf32>
    %51 = math.exp %50 : vector<1x128xf32>
    %cst_12 = arith.constant 1.000000e+00 : f32
    %52 = vector.broadcast %cst_12 : f32 to vector<1x128xf32>
    %53 = arith.addf %52, %51 : vector<1x128xf32>
    %54 = arith.divf %52, %53 : vector<1x128xf32>
    %55 = vector.extract_strided_slice %54 {offsets = [0, 0], sizes = [1, 32], strides = [1, 1]} : vector<1x128xf32> to vector<1x32xf32>
    %56 = vector.extract_strided_slice %54 {offsets = [0, 32], sizes = [1, 32], strides = [1, 1]} : vector<1x128xf32> to vector<1x32xf32>
    %57 = vector.extract_strided_slice %54 {offsets = [0, 96], sizes = [1, 32], strides = [1, 1]} : vector<1x128xf32> to vector<1x32xf32>
    %58 = vector.extract_strided_slice %49 {offsets = [0, 64], sizes = [1, 32], strides = [1, 1]} : vector<1x128xf32> to vector<1x32xf32>
    %59 = math.tanh %58 : vector<1x32xf32>
    %60 = arith.mulf %56, %44 : vector<1x32xf32>
    %61 = arith.mulf %55, %59 : vector<1x32xf32>
    %62 = arith.addf %60, %61 : vector<1x32xf32>
    %63 = math.tanh %62 : vector<1x32xf32>
    %64 = arith.mulf %57, %63 : vector<1x32xf32>
    %65 = vector.extract_strided_slice %8 {offsets = [3, 0], sizes = [1, 128], strides = [1, 1]} : vector<8x128xf32> to vector<1x128xf32>
    %cst_13 = arith.constant dense<0.000000e+00> : vector<1x128xf32>
    %66 = tpu.matmul %64, %4, %cst_13 {dimension_numbers = #tpu.dot_dimension_numbers<[1], [0], [0], [1], [0, 0, 1, 1], [], []>} : vector<1x32xf32>, vector<32x128xf32>, vector<1x128xf32> -> vector<1x128xf32>
    %67 = arith.addf %65, %66 : vector<1x128xf32>
    %68 = arith.negf %67 : vector<1x128xf32>
    %69 = math.exp %68 : vector<1x128xf32>
    %cst_14 = arith.constant 1.000000e+00 : f32
    %70 = vector.broadcast %cst_14 : f32 to vector<1x128xf32>
    %71 = arith.addf %70, %69 : vector<1x128xf32>
    %72 = arith.divf %70, %71 : vector<1x128xf32>
    %73 = vector.extract_strided_slice %72 {offsets = [0, 0], sizes = [1, 32], strides = [1, 1]} : vector<1x128xf32> to vector<1x32xf32>
    %74 = vector.extract_strided_slice %72 {offsets = [0, 32], sizes = [1, 32], strides = [1, 1]} : vector<1x128xf32> to vector<1x32xf32>
    %75 = vector.extract_strided_slice %72 {offsets = [0, 96], sizes = [1, 32], strides = [1, 1]} : vector<1x128xf32> to vector<1x32xf32>
    %76 = vector.extract_strided_slice %67 {offsets = [0, 64], sizes = [1, 32], strides = [1, 1]} : vector<1x128xf32> to vector<1x32xf32>
    %77 = math.tanh %76 : vector<1x32xf32>
    %78 = arith.mulf %74, %62 : vector<1x32xf32>
    %79 = arith.mulf %73, %77 : vector<1x32xf32>
    %80 = arith.addf %78, %79 : vector<1x32xf32>
    %81 = math.tanh %80 : vector<1x32xf32>
    %82 = arith.mulf %75, %81 : vector<1x32xf32>
    %83 = vector.extract_strided_slice %8 {offsets = [4, 0], sizes = [1, 128], strides = [1, 1]} : vector<8x128xf32> to vector<1x128xf32>
    %cst_15 = arith.constant dense<0.000000e+00> : vector<1x128xf32>
    %84 = tpu.matmul %82, %4, %cst_15 {dimension_numbers = #tpu.dot_dimension_numbers<[1], [0], [0], [1], [0, 0, 1, 1], [], []>} : vector<1x32xf32>, vector<32x128xf32>, vector<1x128xf32> -> vector<1x128xf32>
    %85 = arith.addf %83, %84 : vector<1x128xf32>
    %86 = arith.negf %85 : vector<1x128xf32>
    %87 = math.exp %86 : vector<1x128xf32>
    %cst_16 = arith.constant 1.000000e+00 : f32
    %88 = vector.broadcast %cst_16 : f32 to vector<1x128xf32>
    %89 = arith.addf %88, %87 : vector<1x128xf32>
    %90 = arith.divf %88, %89 : vector<1x128xf32>
    %91 = vector.extract_strided_slice %90 {offsets = [0, 0], sizes = [1, 32], strides = [1, 1]} : vector<1x128xf32> to vector<1x32xf32>
    %92 = vector.extract_strided_slice %90 {offsets = [0, 32], sizes = [1, 32], strides = [1, 1]} : vector<1x128xf32> to vector<1x32xf32>
    %93 = vector.extract_strided_slice %90 {offsets = [0, 96], sizes = [1, 32], strides = [1, 1]} : vector<1x128xf32> to vector<1x32xf32>
    %94 = vector.extract_strided_slice %85 {offsets = [0, 64], sizes = [1, 32], strides = [1, 1]} : vector<1x128xf32> to vector<1x32xf32>
    %95 = math.tanh %94 : vector<1x32xf32>
    %96 = arith.mulf %92, %80 : vector<1x32xf32>
    %97 = arith.mulf %91, %95 : vector<1x32xf32>
    %98 = arith.addf %96, %97 : vector<1x32xf32>
    %99 = math.tanh %98 : vector<1x32xf32>
    %100 = arith.mulf %93, %99 : vector<1x32xf32>
    %101 = vector.extract_strided_slice %8 {offsets = [5, 0], sizes = [1, 128], strides = [1, 1]} : vector<8x128xf32> to vector<1x128xf32>
    %cst_17 = arith.constant dense<0.000000e+00> : vector<1x128xf32>
    %102 = tpu.matmul %100, %4, %cst_17 {dimension_numbers = #tpu.dot_dimension_numbers<[1], [0], [0], [1], [0, 0, 1, 1], [], []>} : vector<1x32xf32>, vector<32x128xf32>, vector<1x128xf32> -> vector<1x128xf32>
    %103 = arith.addf %101, %102 : vector<1x128xf32>
    %104 = arith.negf %103 : vector<1x128xf32>
    %105 = math.exp %104 : vector<1x128xf32>
    %cst_18 = arith.constant 1.000000e+00 : f32
    %106 = vector.broadcast %cst_18 : f32 to vector<1x128xf32>
    %107 = arith.addf %106, %105 : vector<1x128xf32>
    %108 = arith.divf %106, %107 : vector<1x128xf32>
    %109 = vector.extract_strided_slice %108 {offsets = [0, 0], sizes = [1, 32], strides = [1, 1]} : vector<1x128xf32> to vector<1x32xf32>
    %110 = vector.extract_strided_slice %108 {offsets = [0, 32], sizes = [1, 32], strides = [1, 1]} : vector<1x128xf32> to vector<1x32xf32>
    %111 = vector.extract_strided_slice %108 {offsets = [0, 96], sizes = [1, 32], strides = [1, 1]} : vector<1x128xf32> to vector<1x32xf32>
    %112 = vector.extract_strided_slice %103 {offsets = [0, 64], sizes = [1, 32], strides = [1, 1]} : vector<1x128xf32> to vector<1x32xf32>
    %113 = math.tanh %112 : vector<1x32xf32>
    %114 = arith.mulf %110, %98 : vector<1x32xf32>
    %115 = arith.mulf %109, %113 : vector<1x32xf32>
    %116 = arith.addf %114, %115 : vector<1x32xf32>
    %117 = math.tanh %116 : vector<1x32xf32>
    %118 = arith.mulf %111, %117 : vector<1x32xf32>
    %119 = vector.extract_strided_slice %8 {offsets = [6, 0], sizes = [1, 128], strides = [1, 1]} : vector<8x128xf32> to vector<1x128xf32>
    %cst_19 = arith.constant dense<0.000000e+00> : vector<1x128xf32>
    %120 = tpu.matmul %118, %4, %cst_19 {dimension_numbers = #tpu.dot_dimension_numbers<[1], [0], [0], [1], [0, 0, 1, 1], [], []>} : vector<1x32xf32>, vector<32x128xf32>, vector<1x128xf32> -> vector<1x128xf32>
    %121 = arith.addf %119, %120 : vector<1x128xf32>
    %122 = arith.negf %121 : vector<1x128xf32>
    %123 = math.exp %122 : vector<1x128xf32>
    %cst_20 = arith.constant 1.000000e+00 : f32
    %124 = vector.broadcast %cst_20 : f32 to vector<1x128xf32>
    %125 = arith.addf %124, %123 : vector<1x128xf32>
    %126 = arith.divf %124, %125 : vector<1x128xf32>
    %127 = vector.extract_strided_slice %126 {offsets = [0, 0], sizes = [1, 32], strides = [1, 1]} : vector<1x128xf32> to vector<1x32xf32>
    %128 = vector.extract_strided_slice %126 {offsets = [0, 32], sizes = [1, 32], strides = [1, 1]} : vector<1x128xf32> to vector<1x32xf32>
    %129 = vector.extract_strided_slice %126 {offsets = [0, 96], sizes = [1, 32], strides = [1, 1]} : vector<1x128xf32> to vector<1x32xf32>
    %130 = vector.extract_strided_slice %121 {offsets = [0, 64], sizes = [1, 32], strides = [1, 1]} : vector<1x128xf32> to vector<1x32xf32>
    %131 = math.tanh %130 : vector<1x32xf32>
    %132 = arith.mulf %128, %116 : vector<1x32xf32>
    %133 = arith.mulf %127, %131 : vector<1x32xf32>
    %134 = arith.addf %132, %133 : vector<1x32xf32>
    %135 = math.tanh %134 : vector<1x32xf32>
    %136 = arith.mulf %129, %135 : vector<1x32xf32>
    %137 = vector.extract_strided_slice %8 {offsets = [7, 0], sizes = [1, 128], strides = [1, 1]} : vector<8x128xf32> to vector<1x128xf32>
    %cst_21 = arith.constant dense<0.000000e+00> : vector<1x128xf32>
    %138 = tpu.matmul %136, %4, %cst_21 {dimension_numbers = #tpu.dot_dimension_numbers<[1], [0], [0], [1], [0, 0, 1, 1], [], []>} : vector<1x32xf32>, vector<32x128xf32>, vector<1x128xf32> -> vector<1x128xf32>
    %139 = arith.addf %137, %138 : vector<1x128xf32>
    %140 = arith.negf %139 : vector<1x128xf32>
    %141 = math.exp %140 : vector<1x128xf32>
    %cst_22 = arith.constant 1.000000e+00 : f32
    %142 = vector.broadcast %cst_22 : f32 to vector<1x128xf32>
    %143 = arith.addf %142, %141 : vector<1x128xf32>
    %144 = arith.divf %142, %143 : vector<1x128xf32>
    %145 = vector.extract_strided_slice %144 {offsets = [0, 0], sizes = [1, 32], strides = [1, 1]} : vector<1x128xf32> to vector<1x32xf32>
    %146 = vector.extract_strided_slice %144 {offsets = [0, 32], sizes = [1, 32], strides = [1, 1]} : vector<1x128xf32> to vector<1x32xf32>
    %147 = vector.extract_strided_slice %144 {offsets = [0, 96], sizes = [1, 32], strides = [1, 1]} : vector<1x128xf32> to vector<1x32xf32>
    %148 = vector.extract_strided_slice %139 {offsets = [0, 64], sizes = [1, 32], strides = [1, 1]} : vector<1x128xf32> to vector<1x32xf32>
    %149 = math.tanh %148 : vector<1x32xf32>
    %150 = arith.mulf %146, %134 : vector<1x32xf32>
    %151 = arith.mulf %145, %149 : vector<1x32xf32>
    %152 = arith.addf %150, %151 : vector<1x32xf32>
    %153 = math.tanh %152 : vector<1x32xf32>
    %154 = arith.mulf %147, %153 : vector<1x32xf32>
    %155 = tpu.concatenate %28, %46, %64, %82, %100, %118, %136, %154 in 0 : vector<1x32xf32>, vector<1x32xf32>, vector<1x32xf32>, vector<1x32xf32>, vector<1x32xf32>, vector<1x32xf32>, vector<1x32xf32>, vector<1x32xf32> -> vector<8x32xf32>
    %156 = tpu.concatenate %155, %2 in 1 : vector<8x32xf32>, vector<8x8xf32> -> vector<8x40xf32>
    %c0_23 = arith.constant 0 : index
    %c0_24 = arith.constant 0 : index
    %157 = vector.load %arg2[%c0_23, %c0_24] : memref<41x8xf32, #tpu.memory_space<vmem>>, vector<40x8xf32>
    %c40 = arith.constant 40 : index
    %c0_25 = arith.constant 0 : index
    %158 = vector.load %arg2[%c40, %c0_25] : memref<41x8xf32, #tpu.memory_space<vmem>>, vector<1x8xf32>
    %cst_26 = arith.constant dense<0.000000e+00> : vector<8x8xf32>
    %159 = tpu.matmul %156, %157, %cst_26 {dimension_numbers = #tpu.dot_dimension_numbers<[1], [0], [0], [1], [0, 0, 1, 1], [], []>} : vector<8x40xf32>, vector<40x8xf32>, vector<8x8xf32> -> vector<8x8xf32>
    %160 = vector.broadcast %158 : vector<1x8xf32> to vector<8x8xf32>
    %161 = arith.addf %159, %160 : vector<8x8xf32>
    %cst_27 = arith.constant dense<0xFF800000> : vector<8xf32>
    %162 = vector.multi_reduction <maximumf>, %161, %cst_27 [1] : vector<8x8xf32> to vector<8xf32>
    %163 = vector.shape_cast %162 : vector<8xf32> to vector<8x1xf32>
    %164 = vector.broadcast %163 : vector<8x1xf32> to vector<8x8xf32>
    %165 = arith.subf %161, %164 : vector<8x8xf32>
    %166 = math.exp %165 : vector<8x8xf32>
    %cst_28 = arith.constant dense<0.000000e+00> : vector<8xf32>
    %167 = vector.multi_reduction <add>, %166, %cst_28 [1] : vector<8x8xf32> to vector<8xf32>
    %168 = vector.shape_cast %167 : vector<8xf32> to vector<8x1xf32>
    %169 = math.log %168 : vector<8x1xf32>
    %170 = vector.broadcast %169 : vector<8x1xf32> to vector<8x8xf32>
    %171 = arith.subf %165, %170 : vector<8x8xf32>
    %c0_29 = arith.constant 0 : index
    %c0_30 = arith.constant 0 : index
    %172 = vector.load %arg3[%c0_29, %c0_30] : memref<8x8xf32, #tpu.memory_space<vmem>>, vector<8x8xf32>
    tpu.vector_store %arg3[%c0_29, %c0_30], %171 {strides = array<i32>} : memref<8x8xf32, #tpu.memory_space<vmem>>, vector<8x8xf32>,
    return
  }
}

</mosaic_0001>

<llo_original>
// kernel: tpu_custom_call.1
$region0: #{tpu_custom_call.1}
  #allocation0 [shape = 'u32[]', space=smem, size = 0x4, offset = 0x4, fixed_abs, tag = 'smem constant byte address 0x4 - core index']
  #allocation1 [shape = 'u32[144,128]{1,0:T(1,128)}', space=vmem, size = 0x12000, scoped, tag = 'internal scratch']
  %s0 = inlined_call_operand.hbm [shape: f32[8,24], index: 0, kind: input, shape index: {}]
  %s1 = inlined_call_operand.vmem [shape: f32[49,128], index: 1, kind: input, shape index: {}]
  %s2 = inlined_call_operand.vmem [shape: f32[41,8], index: 2, kind: input, shape index: {}]
  %s3 = inlined_call_operand.hbm [shape: f32[8,8], index: 3, kind: output, shape index: {}]
  %s4 = sld [smem:[#allocation0]]
  $region26: #{tpu_custom_call.1} parent=0
    _
  %s6 = ssub.s32 1, %s4
  %s7 = scalar_select 0, %s6, %s4
  $region1: #{tpu_custom_call.1} parent=0
    #allocation2 [shape = 'u8[4096]{0}', space=vmem, size = 0x1000, scoped, tag = 'input window, operand 0, single buffered']
    #allocation3 [shape = 's32[1]{0}', space=sflag, size = 0x4, scoped, tag = 'scoped memory for tpu_custom_call.1']
    #allocation4 [shape = 's32[1]{0}', space=sflag, size = 0x4, scoped, tag = 'scoped memory for tpu_custom_call.1']
    #allocation5 [shape = 'u8[4096]{0}', space=vmem, size = 0x1000, scoped, tag = 'output window, operand 0, single buffered']
    %8 = vsyncpa [#allocation3], 0
    %9 = vsyncpa [#allocation4], 0
    // Predicated region
    $region2: #{tpu_custom_call.1} parent=1 // pred_check
      _
    $region3: #{tpu_custom_call.1} parent=1 // pred_check_branch
      %11 = sbr.rel (0) target = $region5
    $region4: #{tpu_custom_call.1} parent=1 // pred_region
      %s13 = ssub.s32 128, 128
      %14 = vsyncadd [#allocation3], %s13
      %s16 = sshll.u32 [#allocation2], 4
      %s17 = int_to_ptr.vmem [resolvable:$true] %s16
      %19 = dma.hbm_to_vmem [thread:$0]  %s0, 128, %s17, [#allocation3]
    $region5: #{tpu_custom_call.1} parent=1 // pred_fallthru
      _
    // Predicated region
    $region6: #{tpu_custom_call.1} parent=1 // pred_check
      _
    $region7: #{tpu_custom_call.1} parent=1 // pred_check_branch
      %21 = sbr.rel (0) target = $region9
    $region8: #{tpu_custom_call.1} parent=1 // pred_region
      _
    $region9: #{tpu_custom_call.1} parent=1 // pred_fallthru
      _
    // Predicated region
    $region10: #{tpu_custom_call.1} parent=1 // pred_check
      _
    $region11: #{tpu_custom_call.1} parent=1 // pred_check_branch
      %23 = sbr.rel (0) target = $region13
    $region12: #{tpu_custom_call.1} parent=1 // pred_region
      _
    $region13: #{tpu_custom_call.1} parent=1 // pred_fallthru
      _
    // Predicated region
    $region14: #{tpu_custom_call.1} parent=1 // pred_check
      _
    $region15: #{tpu_custom_call.1} parent=1 // pred_check_branch
      %25 = sbr.rel (0) target = $region17
    $region16: #{tpu_custom_call.1} parent=1 // pred_region
      %26 = dma.done [#allocation3], 128
    $region17: #{tpu_custom_call.1} parent=1 // pred_fallthru
      _
    %v27 = vld [vmem:[#allocation2] sm:$0xff]
    %v28 = vld [vmem:[%s1] sm:$0xff]
    %v29 = vld [vmem:[%s1 + $0x8] sm:$0xff]
    %v30 = vld [vmem:[%s1 + $0x10] sm:$0xff]
    %v31 = vld [vmem:[%s1 + $0x18] sm:$0xff]
    %v32 = vld [vmem:[%s1 + $0x20] sm:$0xff]
    %v33 = vld [vmem:[%s1 + $0x28] sm:$0xff]
    %v34 = vld [vmem:[%s1 + $0x30] sm:$0x1]
    %v35 = vlaneseq
    %v36 = vshrl.u32 %v35, 7
    %v37 = vsub.s32 0, %v36
    %v38 = vrot.slane %v34, %v37
    %vm39 = vcmask 130048
    %v41 = vsel %vm39, %v27, 0
    %43 = vmatprep.subr.mxu0 0.0
    %44 = vmatpush1.msra.mxu0 0.0
    %45 = vmatprep.subr.mxu0 0.0
    %46 = vmatpush1.msra.mxu0 0.0
    %47 = vmatprep.subr.mxu0 0.0
    %48 = vmatpush1.msra.mxu0 0.0
    %49 = vmatprep.subr.mxu0 0.0
    %50 = vmatpush1.msra.mxu0 0.0
    %51 = vmatprep.subr.mxu0 0.0
    %52 = vmatpush1.msra.mxu0 0.0
    %53 = vmatprep.subr.mxu0 0.0
    %54 = vmatpush1.msra.mxu0 0.0
    %55 = vmatprep.subr.mxu0 0.0
    %56 = vmatpush1.msra.mxu0 0.0
    %57 = vmatprep.subr.mxu0 0.0
    %58 = vmatpush1.msra.mxu0 0.0
    %59 = vmatprep.subr.mxu0 0.0
    %60 = vmatpush1.msra.mxu0 0.0
    %61 = vmatprep.subr.mxu0 0.0
    %62 = vmatpush1.msra.mxu0 0.0
    %63 = vmatprep.subr.mxu0 0.0
    %64 = vmatpush1.msra.mxu0 0.0
    %65 = vmatprep.subr.mxu0 0.0
    %66 = vmatpush1.msra.mxu0 0.0
    %67 = vmatprep.subr.mxu0 0.0
    %68 = vmatpush1.msra.mxu0 0.0
    %69 = vmatprep.subr.mxu0 0.0
    %70 = vmatpush1.msra.mxu0 0.0
    %71 = vmatprep.subr.mxu0 0.0
    %72 = vmatpush1.msra.mxu0 %v29
    %73 = vmatprep.subr.mxu0 0.0
    %74 = vmatpush1.msra.mxu0 %v28
    %75 = vmatprep.subr.mxu0 0.0
    %76 = vmatpush2.msra.mxu0 0.0
    %77 = vmatprep.subr.mxu0 0.0
    %78 = vmatpush2.msra.mxu0 0.0
    %79 = vmatprep.subr.mxu0 0.0
    %80 = vmatpush2.msra.mxu0 0.0
    %81 = vmatprep.subr.mxu0 0.0
    %82 = vmatpush2.msra.mxu0 0.0
    %83 = vmatprep.subr.mxu0 0.0
    %84 = vmatpush2.msra.mxu0 0.0
    %85 = vmatprep.subr.mxu0 0.0
    %86 = vmatpush2.msra.mxu0 0.0
    %87 = vmatprep.subr.mxu0 0.0
    %88 = vmatpush2.msra.mxu0 0.0
    %89 = vmatprep.subr.mxu0 0.0
    %90 = vmatpush2.msra.mxu0 0.0
    %91 = vmatprep.subr.mxu0 0.0
    %92 = vmatpush2.msra.mxu0 0.0
    %93 = vmatprep.subr.mxu0 0.0
    %94 = vmatpush2.msra.mxu0 0.0
    %95 = vmatprep.subr.mxu0 0.0
    %96 = vmatpush2.msra.mxu0 0.0
    %97 = vmatprep.subr.mxu0 0.0
    %98 = vmatpush2.msra.mxu0 0.0
    %99 = vmatprep.subr.mxu0 0.0
    %100 = vmatpush2.msra.mxu0 0.0
    %101 = vmatprep.subr.mxu0 0.0
    %102 = vmatpush2.msra.mxu0 0.0
    %103 = vmatprep.subr.mxu0 0.0
    %104 = vmatpush2.msra.mxu0 0.0
    %105 = vmatprep.subr.mxu0 0.0
    %106 = vmatpush2.msra.mxu0 0.0
    %107 = vmatprep.mubr.f32.mxu0 0.0
    %108 = vmatmul.mubr.f32.gmra.mxu0 %v41
    %v109 = vpop.f32.mrf.mxu0
    %v110 = vadd.f32 %v38, %v109
    %v111 = vpop.f32.mrf.mxu0
    %112 = vdwg.mxu0
    %vm113 = vcmask 261120
    %v115 = vsel %vm113, 0.0, 0
    %117 = vmatprep.subr.mxu0 0.0
    %118 = vmatpush1.msra.mxu0 0.0
    %119 = vmatprep.subr.mxu0 0.0
    %120 = vmatpush1.msra.mxu0 0.0
    %121 = vmatprep.subr.mxu0 0.0
    %122 = vmatpush1.msra.mxu0 0.0
    %123 = vmatprep.subr.mxu0 0.0
    %124 = vmatpush1.msra.mxu0 0.0
    %125 = vmatprep.subr.mxu0 0.0
    %126 = vmatpush1.msra.mxu0 0.0
    %127 = vmatprep.subr.mxu0 0.0
    %128 = vmatpush1.msra.mxu0 0.0
    %129 = vmatprep.subr.mxu0 0.0
    %130 = vmatpush1.msra.mxu0 0.0
    %131 = vmatprep.subr.mxu0 0.0
    %132 = vmatpush1.msra.mxu0 0.0
    %133 = vmatprep.subr.mxu0 0.0
    %134 = vmatpush1.msra.mxu0 0.0
    %135 = vmatprep.subr.mxu0 0.0
    %136 = vmatpush1.msra.mxu0 0.0
    %137 = vmatprep.subr.mxu0 0.0
    %138 = vmatpush1.msra.mxu0 0.0
    %139 = vmatprep.subr.mxu0 0.0
    %140 = vmatpush1.msra.mxu0 0.0
    %141 = vmatprep.subr.mxu0 0.0
    %142 = vmatpush1.msra.mxu0 %v33
    %143 = vmatprep.subr.mxu0 0.0
    %144 = vmatpush1.msra.mxu0 %v32
    %145 = vmatprep.subr.mxu0 0.0
    %146 = vmatpush1.msra.mxu0 %v31
    %147 = vmatprep.subr.mxu0 0.0
    %148 = vmatpush1.msra.mxu0 %v30
    %149 = vmatprep.subr.mxu0 0.0
    %150 = vmatpush2.msra.mxu0 0.0
    %151 = vmatprep.subr.mxu0 0.0
    %152 = vmatpush2.msra.mxu0 0.0
    %153 = vmatprep.subr.mxu0 0.0
    %154 = vmatpush2.msra.mxu0 0.0
    %155 = vmatprep.subr.mxu0 0.0
    %156 = vmatpush2.msra.mxu0 0.0
    %157 = vmatprep.subr.mxu0 0.0
    %158 = vmatpush2.msra.mxu0 0.0
    %159 = vmatprep.subr.mxu0 0.0
    %160 = vmatpush2.msra.mxu0 0.0
    %161 = vmatprep.subr.mxu0 0.0
    %162 = vmatpush2.msra.mxu0 0.0
    %163 = vmatprep.subr.mxu0 0.0
    %164 = vmatpush2.msra.mxu0 0.0
    %165 = vmatprep.subr.mxu0 0.0
    %166 = vmatpush2.msra.mxu0 0.0
    %167 = vmatprep.subr.mxu0 0.0
    %168 = vmatpush2.msra.mxu0 0.0
    %169 = vmatprep.subr.mxu0 0.0
    %170 = vmatpush2.msra.mxu0 0.0
    %171 = vmatprep.subr.mxu0 0.0
    %172 = vmatpush2.msra.mxu0 0.0
    %173 = vmatprep.subr.mxu0 0.0
    %174 = vmatpush2.msra.mxu0 0.0
    %175 = vmatprep.subr.mxu0 0.0
    %176 = vmatpush2.msra.mxu0 0.0
    %177 = vmatprep.subr.mxu0 0.0
    %178 = vmatpush2.msra.mxu0 0.0
    %179 = vmatprep.subr.mxu0 0.0
    %180 = vmatpush2.msra.mxu0 0.0
    %181 = vmatprep.mubr.f32.mxu0 0.0
    %182 = vmatmul.mubr.f32.gmra.mxu0 %v115
    %v183 = vpop.f32.mrf.mxu0
    %v184 = vadd.f32 0.0, %v183
    %v185 = vpop.f32.mrf.mxu0
    %186 = vdwg.mxu0
    %v187 = vadd.f32 %v110, %v184
    %v188 = vxor.u32 %v187, 2147483648
    %v189 = vmul.f32 %v188, 1.442695
    %v190 = vpow.pop %v189
    %v191 = vadd.f32 %v190, 1.0
    %v192 = vrcp.pop %v191
    %v193 = vmul.f32 1.0, %v192
    %v194 = vtanh.pop %v187
    %v195 = vmul.f32 %v193, 0.0
    %197 = vrot.lane.b32.xlu0 %v194, 64
    %v198 = vpop.permute.xlu0 %197
    %v200 = vmul.f32 %v193, %v198
    %202 = vrot.lane.b32.xlu0 %v200, 32
    %v203 = vpop.permute.xlu0 %202
    %v205 = vadd.f32 %v195, %v203
    %v206 = vtanh.pop %v205
    %208 = vrot.lane.b32.xlu0 %v206, 64
    %v209 = vpop.permute.xlu0 %208
    %v211 = vmul.f32 %v193, %v209
    %213 = vrot.lane.b32.xlu0 %v211, 32
    %v214 = vpop.permute.xlu0 %213
    %v215 = vsel %vm113, %v214, 0
    %217 = vmatprep.subr.mxu0 0.0
    %218 = vmatpush1.msra.mxu0 0.0
    %219 = vmatprep.subr.mxu0 0.0
    %220 = vmatpush1.msra.mxu0 0.0
    %221 = vmatprep.subr.mxu0 0.0
    %222 = vmatpush1.msra.mxu0 0.0
    %223 = vmatprep.subr.mxu0 0.0
    %224 = vmatpush1.msra.mxu0 0.0
    %225 = vmatprep.subr.mxu0 0.0
    %226 = vmatpush1.msra.mxu0 0.0
    %227 = vmatprep.subr.mxu0 0.0
    %228 = vmatpush1.msra.mxu0 0.0
    %229 = vmatprep.subr.mxu0 0.0
    %230 = vmatpush1.msra.mxu0 0.0
    %231 = vmatprep.subr.mxu0 0.0
    %232 = vmatpush1.msra.mxu0 0.0
    %233 = vmatprep.subr.mxu0 0.0
    %234 = vmatpush1.msra.mxu0 0.0
    %235 = vmatprep.subr.mxu0 0.0
    %236 = vmatpush1.msra.mxu0 0.0
    %237 = vmatprep.subr.mxu0 0.0
    %238 = vmatpush1.msra.mxu0 0.0
    %239 = vmatprep.subr.mxu0 0.0
    %240 = vmatpush1.msra.mxu0 0.0
    %241 = vmatprep.subr.mxu0 0.0
    %242 = vmatpush1.msra.mxu0 %v33
    %243 = vmatprep.subr.mxu0 0.0
    %244 = vmatpush1.msra.mxu0 %v32
    %245 = vmatprep.subr.mxu0 0.0
    %246 = vmatpush1.msra.mxu0 %v31
    %247 = vmatprep.subr.mxu0 0.0
    %248 = vmatpush1.msra.mxu0 %v30
    %249 = vmatprep.subr.mxu0 0.0
    %250 = vmatpush2.msra.mxu0 0.0
    %251 = vmatprep.subr.mxu0 0.0
    %252 = vmatpush2.msra.mxu0 0.0
    %253 = vmatprep.subr.mxu0 0.0
    %254 = vmatpush2.msra.mxu0 0.0
    %255 = vmatprep.subr.mxu0 0.0
    %256 = vmatpush2.msra.mxu0 0.0
    %257 = vmatprep.subr.mxu0 0.0
    %258 = vmatpush2.msra.mxu0 0.0
    %259 = vmatprep.subr.mxu0 0.0
    %260 = vmatpush2.msra.mxu0 0.0
    %261 = vmatprep.subr.mxu0 0.0
    %262 = vmatpush2.msra.mxu0 0.0
    %263 = vmatprep.subr.mxu0 0.0
    %264 = vmatpush2.msra.mxu0 0.0
    %265 = vmatprep.subr.mxu0 0.0
    %266 = vmatpush2.msra.mxu0 0.0
    %267 = vmatprep.subr.mxu0 0.0
    %268 = vmatpush2.msra.mxu0 0.0
    %269 = vmatprep.subr.mxu0 0.0
    %270 = vmatpush2.msra.mxu0 0.0
    %271 = vmatprep.subr.mxu0 0.0
    %272 = vmatpush2.msra.mxu0 0.0
    %273 = vmatprep.subr.mxu0 0.0
    %274 = vmatpush2.msra.mxu0 0.0
    %275 = vmatprep.subr.mxu0 0.0
    %276 = vmatpush2.msra.mxu0 0.0
    %277 = vmatprep.subr.mxu0 0.0
    %278 = vmatpush2.msra.mxu0 0.0
    %279 = vmatprep.subr.mxu0 0.0
    %280 = vmatpush2.msra.mxu0 0.0
    %281 = vmatprep.mubr.f32.mxu0 0.0
    %282 = vmatmul.mubr.f32.gmra.mxu0 %v215
    %v283 = vpop.f32.mrf.mxu0
    %v284 = vadd.f32 0.0, %v283
    %v285 = vpop.f32.mrf.mxu0
    %286 = vdwg.mxu0
    %v288 = vrot.slane %v284, 7
    %v290 = vadd.f32 %v110, %v288
    %v291 = vxor.u32 %v290, 2147483648
    %v292 = vmul.f32 %v291, 1.442695
    %v293 = vpow.pop %v292
    %v294 = vadd.f32 %v293, 1.0
    %v295 = vrcp.pop %v294
    %v296 = vmul.f32 1.0, %v295
    %v297 = vtanh.pop %v290
    %v299 = vrot.slane %v205, 7
    %v301 = vmul.f32 %v296, %v299
    %303 = vrot.lane.b32.xlu0 %v297, 64
    %v304 = vpop.permute.xlu0 %303
    %v306 = vmul.f32 %v296, %v304
    %308 = vrot.lane.b32.xlu0 %v306, 32
    %v309 = vpop.permute.xlu0 %308
    %v311 = vadd.f32 %v301, %v309
    %v312 = vtanh.pop %v311
    %314 = vrot.lane.b32.xlu0 %v312, 64
    %v315 = vpop.permute.xlu0 %314
    %v317 = vmul.f32 %v296, %v315
    %v319 = vrot.slane %v317, 1
    %320 = vrot.lane.b32.xlu0 %v319, 32
    %v321 = vpop.permute.xlu0 %320
    %v322 = vsel %vm113, %v321, 0
    %324 = vmatprep.subr.mxu0 0.0
    %325 = vmatpush1.msra.mxu0 0.0
    %326 = vmatprep.subr.mxu0 0.0
    %327 = vmatpush1.msra.mxu0 0.0
    %328 = vmatprep.subr.mxu0 0.0
    %329 = vmatpush1.msra.mxu0 0.0
    %330 = vmatprep.subr.mxu0 0.0
    %331 = vmatpush1.msra.mxu0 0.0
    %332 = vmatprep.subr.mxu0 0.0
    %333 = vmatpush1.msra.mxu0 0.0
    %334 = vmatprep.subr.mxu0 0.0
    %335 = vmatpush1.msra.mxu0 0.0
    %336 = vmatprep.subr.mxu0 0.0
    %337 = vmatpush1.msra.mxu0 0.0
    %338 = vmatprep.subr.mxu0 0.0
    %339 = vmatpush1.msra.mxu0 0.0
    %340 = vmatprep.subr.mxu0 0.0
    %341 = vmatpush1.msra.mxu0 0.0
    %342 = vmatprep.subr.mxu0 0.0
    %343 = vmatpush1.msra.mxu0 0.0
    %344 = vmatprep.subr.mxu0 0.0
    %345 = vmatpush1.msra.mxu0 0.0
    %346 = vmatprep.subr.mxu0 0.0
    %347 = vmatpush1.msra.mxu0 0.0
    %348 = vmatprep.subr.mxu0 0.0
    %349 = vmatpush1.msra.mxu0 %v33
    %350 = vmatprep.subr.mxu0 0.0
    %351 = vmatpush1.msra.mxu0 %v32
    %352 = vmatprep.subr.mxu0 0.0
    %353 = vmatpush1.msra.mxu0 %v31
    %354 = vmatprep.subr.mxu0 0.0
    %355 = vmatpush1.msra.mxu0 %v30
    %356 = vmatprep.subr.mxu0 0.0
    %357 = vmatpush2.msra.mxu0 0.0
    %358 = vmatprep.subr.mxu0 0.0
    %359 = vmatpush2.msra.mxu0 0.0
    %360 = vmatprep.subr.mxu0 0.0
    %361 = vmatpush2.msra.mxu0 0.0
    %362 = vmatprep.subr.mxu0 0.0
    %363 = vmatpush2.msra.mxu0 0.0
    %364 = vmatprep.subr.mxu0 0.0
    %365 = vmatpush2.msra.mxu0 0.0
    %366 = vmatprep.subr.mxu0 0.0
    %367 = vmatpush2.msra.mxu0 0.0
    %368 = vmatprep.subr.mxu0 0.0
    %369 = vmatpush2.msra.mxu0 0.0
    %370 = vmatprep.subr.mxu0 0.0
    %371 = vmatpush2.msra.mxu0 0.0
    %372 = vmatprep.subr.mxu0 0.0
    %373 = vmatpush2.msra.mxu0 0.0
    %374 = vmatprep.subr.mxu0 0.0
    %375 = vmatpush2.msra.mxu0 0.0
    %376 = vmatprep.subr.mxu0 0.0
    %377 = vmatpush2.msra.mxu0 0.0
    %378 = vmatprep.subr.mxu0 0.0
    %379 = vmatpush2.msra.mxu0 0.0
    %380 = vmatprep.subr.mxu0 0.0
    %381 = vmatpush2.msra.mxu0 0.0
    %382 = vmatprep.subr.mxu0 0.0
    %383 = vmatpush2.msra.mxu0 0.0
    %384 = vmatprep.subr.mxu0 0.0
    %385 = vmatpush2.msra.mxu0 0.0
    %386 = vmatprep.subr.mxu0 0.0
    %387 = vmatpush2.msra.mxu0 0.0
    %388 = vmatprep.mubr.f32.mxu0 0.0
    %389 = vmatmul.mubr.f32.gmra.mxu0 %v322
    %v390 = vpop.f32.mrf.mxu0
    %v391 = vadd.f32 0.0, %v390
    %v392 = vpop.f32.mrf.mxu0
    %393 = vdwg.mxu0
    %v395 = vrot.slane %v391, 6
    %v397 = vadd.f32 %v110, %v395
    %v398 = vxor.u32 %v397, 2147483648
    %v399 = vmul.f32 %v398, 1.442695
    %v400 = vpow.pop %v399
    %v401 = vadd.f32 %v400, 1.0
    %v402 = vrcp.pop %v401
    %v403 = vmul.f32 1.0, %v402
    %v404 = vtanh.pop %v397
    %v406 = vrot.slane %v311, 7
    %v408 = vmul.f32 %v403, %v406
    %410 = vrot.lane.b32.xlu0 %v404, 64
    %v411 = vpop.permute.xlu0 %410
    %v413 = vmul.f32 %v403, %v411
    %415 = vrot.lane.b32.xlu0 %v413, 32
    %v416 = vpop.permute.xlu0 %415
    %v418 = vadd.f32 %v408, %v416
    %v419 = vtanh.pop %v418
    %421 = vrot.lane.b32.xlu0 %v419, 64
    %v422 = vpop.permute.xlu0 %421
    %v424 = vmul.f32 %v403, %v422
    %v426 = vrot.slane %v424, 2
    %427 = vrot.lane.b32.xlu0 %v426, 32
    %v428 = vpop.permute.xlu0 %427
    %v429 = vsel %vm113, %v428, 0
    %431 = vmatprep.subr.mxu0 0.0
    %432 = vmatpush1.msra.mxu0 0.0
    %433 = vmatprep.subr.mxu0 0.0
    %434 = vmatpush1.msra.mxu0 0.0
    %435 = vmatprep.subr.mxu0 0.0
    %436 = vmatpush1.msra.mxu0 0.0
    %437 = vmatprep.subr.mxu0 0.0
    %438 = vmatpush1.msra.mxu0 0.0
    %439 = vmatprep.subr.mxu0 0.0
    %440 = vmatpush1.msra.mxu0 0.0
    %441 = vmatprep.subr.mxu0 0.0
    %442 = vmatpush1.msra.mxu0 0.0
    %443 = vmatprep.subr.mxu0 0.0
    %444 = vmatpush1.msra.mxu0 0.0
    %445 = vmatprep.subr.mxu0 0.0
    %446 = vmatpush1.msra.mxu0 0.0
    %447 = vmatprep.subr.mxu0 0.0
    %448 = vmatpush1.msra.mxu0 0.0
    %449 = vmatprep.subr.mxu0 0.0
    %450 = vmatpush1.msra.mxu0 0.0
    %451 = vmatprep.subr.mxu0 0.0
    %452 = vmatpush1.msra.mxu0 0.0
    %453 = vmatprep.subr.mxu0 0.0
    %454 = vmatpush1.msra.mxu0 0.0
    %455 = vmatprep.subr.mxu0 0.0
    %456 = vmatpush1.msra.mxu0 %v33
    %457 = vmatprep.subr.mxu0 0.0
    %458 = vmatpush1.msra.mxu0 %v32
    %459 = vmatprep.subr.mxu0 0.0
    %460 = vmatpush1.msra.mxu0 %v31
    %461 = vmatprep.subr.mxu0 0.0
    %462 = vmatpush1.msra.mxu0 %v30
    %463 = vmatprep.subr.mxu0 0.0
    %464 = vmatpush2.msra.mxu0 0.0
    %465 = vmatprep.subr.mxu0 0.0
    %466 = vmatpush2.msra.mxu0 0.0
    %467 = vmatprep.subr.mxu0 0.0
    %468 = vmatpush2.msra.mxu0 0.0
    %469 = vmatprep.subr.mxu0 0.0
    %470 = vmatpush2.msra.mxu0 0.0
    %471 = vmatprep.subr.mxu0 0.0
    %472 = vmatpush2.msra.mxu0 0.0
    %473 = vmatprep.subr.mxu0 0.0
    %474 = vmatpush2.msra.mxu0 0.0
    %475 = vmatprep.subr.mxu0 0.0
    %476 = vmatpush2.msra.mxu0 0.0
    %477 = vmatprep.subr.mxu0 0.0
    %478 = vmatpush2.msra.mxu0 0.0
    %479 = vmatprep.subr.mxu0 0.0
    %480 = vmatpush2.msra.mxu0 0.0
    %481 = vmatprep.subr.mxu0 0.0
    %482 = vmatpush2.msra.mxu0 0.0
    %483 = vmatprep.subr.mxu0 0.0
    %484 = vmatpush2.msra.mxu0 0.0
    %485 = vmatprep.subr.mxu0 0.0
    %486 = vmatpush2.msra.mxu0 0.0
    %487 = vmatprep.subr.mxu0 0.0
    %488 = vmatpush2.msra.mxu0 0.0
    %489 = vmatprep.subr.mxu0 0.0
    %490 = vmatpush2.msra.mxu0 0.0
    %491 = vmatprep.subr.mxu0 0.0
    %492 = vmatpush2.msra.mxu0 0.0
    %493 = vmatprep.subr.mxu0 0.0
    %494 = vmatpush2.msra.mxu0 0.0
    %495 = vmatprep.mubr.f32.mxu0 0.0
    %496 = vmatmul.mubr.f32.gmra.mxu0 %v429
    %v497 = vpop.f32.mrf.mxu0
    %v498 = vadd.f32 0.0, %v497
    %v499 = vpop.f32.mrf.mxu0
    %500 = vdwg.mxu0
    %v502 = vrot.slane %v498, 5
    %v504 = vadd.f32 %v110, %v502
    %v505 = vxor.u32 %v504, 2147483648
    %v506 = vmul.f32 %v505, 1.442695
    %v507 = vpow.pop %v506
    %v508 = vadd.f32 %v507, 1.0
    %v509 = vrcp.pop %v508
    %v510 = vmul.f32 1.0, %v509
    %v511 = vtanh.pop %v504
    %v513 = vrot.slane %v418, 7
    %v515 = vmul.f32 %v510, %v513
    %517 = vrot.lane.b32.xlu0 %v511, 64
    %v518 = vpop.permute.xlu0 %517
    %v520 = vmul.f32 %v510, %v518
    %522 = vrot.lane.b32.xlu0 %v520, 32
    %v523 = vpop.permute.xlu0 %522
    %v525 = vadd.f32 %v515, %v523
    %v526 = vtanh.pop %v525
    %528 = vrot.lane.b32.xlu0 %v526, 64
    %v529 = vpop.permute.xlu0 %528
    %v531 = vmul.f32 %v510, %v529
    %v533 = vrot.slane %v531, 3
    %534 = vrot.lane.b32.xlu0 %v533, 32
    %v535 = vpop.permute.xlu0 %534
    %v536 = vsel %vm113, %v535, 0
    %538 = vmatprep.subr.mxu0 0.0
    %539 = vmatpush1.msra.mxu0 0.0
    %540 = vmatprep.subr.mxu0 0.0
    %541 = vmatpush1.msra.mxu0 0.0
    %542 = vmatprep.subr.mxu0 0.0
    %543 = vmatpush1.msra.mxu0 0.0
    %544 = vmatprep.subr.mxu0 0.0
    %545 = vmatpush1.msra.mxu0 0.0
    %546 = vmatprep.subr.mxu0 0.0
    %547 = vmatpush1.msra.mxu0 0.0
    %548 = vmatprep.subr.mxu0 0.0
    %549 = vmatpush1.msra.mxu0 0.0
    %550 = vmatprep.subr.mxu0 0.0
    %551 = vmatpush1.msra.mxu0 0.0
    %552 = vmatprep.subr.mxu0 0.0
    %553 = vmatpush1.msra.mxu0 0.0
    %554 = vmatprep.subr.mxu0 0.0
    %555 = vmatpush1.msra.mxu0 0.0
    %556 = vmatprep.subr.mxu0 0.0
    %557 = vmatpush1.msra.mxu0 0.0
    %558 = vmatprep.subr.mxu0 0.0
    %559 = vmatpush1.msra.mxu0 0.0
    %560 = vmatprep.subr.mxu0 0.0
    %561 = vmatpush1.msra.mxu0 0.0
    %562 = vmatprep.subr.mxu0 0.0
    %563 = vmatpush1.msra.mxu0 %v33
    %564 = vmatprep.subr.mxu0 0.0
    %565 = vmatpush1.msra.mxu0 %v32
    %566 = vmatprep.subr.mxu0 0.0
    %567 = vmatpush1.msra.mxu0 %v31
    %568 = vmatprep.subr.mxu0 0.0
    %569 = vmatpush1.msra.mxu0 %v30
    %570 = vmatprep.subr.mxu0 0.0
    %571 = vmatpush2.msra.mxu0 0.0
    %572 = vmatprep.subr.mxu0 0.0
    %573 = vmatpush2.msra.mxu0 0.0
    %574 = vmatprep.subr.mxu0 0.0
    %575 = vmatpush2.msra.mxu0 0.0
    %576 = vmatprep.subr.mxu0 0.0
    %577 = vmatpush2.msra.mxu0 0.0
    %578 = vmatprep.subr.mxu0 0.0
    %579 = vmatpush2.msra.mxu0 0.0
    %580 = vmatprep.subr.mxu0 0.0
    %581 = vmatpush2.msra.mxu0 0.0
    %582 = vmatprep.subr.mxu0 0.0
    %583 = vmatpush2.msra.mxu0 0.0
    %584 = vmatprep.subr.mxu0 0.0
    %585 = vmatpush2.msra.mxu0 0.0
    %586 = vmatprep.subr.mxu0 0.0
    %587 = vmatpush2.msra.mxu0 0.0
    %588 = vmatprep.subr.mxu0 0.0
    %589 = vmatpush2.msra.mxu0 0.0
    %590 = vmatprep.subr.mxu0 0.0
    %591 = vmatpush2.msra.mxu0 0.0
    %592 = vmatprep.subr.mxu0 0.0
    %593 = vmatpush2.msra.mxu0 0.0
    %594 = vmatprep.subr.mxu0 0.0
    %595 = vmatpush2.msra.mxu0 0.0
    %596 = vmatprep.subr.mxu0 0.0
    %597 = vmatpush2.msra.mxu0 0.0
    %598 = vmatprep.subr.mxu0 0.0
    %599 = vmatpush2.msra.mxu0 0.0
    %600 = vmatprep.subr.mxu0 0.0
    %601 = vmatpush2.msra.mxu0 0.0
    %602 = vmatprep.mubr.f32.mxu0 0.0
    %603 = vmatmul.mubr.f32.gmra.mxu0 %v536
    %v604 = vpop.f32.mrf.mxu0
    %v605 = vadd.f32 0.0, %v604
    %v606 = vpop.f32.mrf.mxu0
    %607 = vdwg.mxu0
    %v609 = vrot.slane %v605, 4
    %v611 = vadd.f32 %v110, %v609
    %v612 = vxor.u32 %v611, 2147483648
    %v613 = vmul.f32 %v612, 1.442695
    %v614 = vpow.pop %v613
    %v615 = vadd.f32 %v614, 1.0
    %v616 = vrcp.pop %v615
    %v617 = vmul.f32 1.0, %v616
    %v618 = vtanh.pop %v611
    %v620 = vrot.slane %v525, 7
    %v622 = vmul.f32 %v617, %v620
    %624 = vrot.lane.b32.xlu0 %v618, 64
    %v625 = vpop.permute.xlu0 %624
    %v627 = vmul.f32 %v617, %v625
    %629 = vrot.lane.b32.xlu0 %v627, 32
    %v630 = vpop.permute.xlu0 %629
    %v632 = vadd.f32 %v622, %v630
    %v633 = vtanh.pop %v632
    %635 = vrot.lane.b32.xlu0 %v633, 64
    %v636 = vpop.permute.xlu0 %635
    %v638 = vmul.f32 %v617, %v636
    %v640 = vrot.slane %v638, 4
    %641 = vrot.lane.b32.xlu0 %v640, 32
    %v642 = vpop.permute.xlu0 %641
    %v643 = vsel %vm113, %v642, 0
    %645 = vmatprep.subr.mxu0 0.0
    %646 = vmatpush1.msra.mxu0 0.0
    %647 = vmatprep.subr.mxu0 0.0
    %648 = vmatpush1.msra.mxu0 0.0
    %649 = vmatprep.subr.mxu0 0.0
    %650 = vmatpush1.msra.mxu0 0.0
    %651 = vmatprep.subr.mxu0 0.0
    %652 = vmatpush1.msra.mxu0 0.0
    %653 = vmatprep.subr.mxu0 0.0
    %654 = vmatpush1.msra.mxu0 0.0
    %655 = vmatprep.subr.mxu0 0.0
    %656 = vmatpush1.msra.mxu0 0.0
    %657 = vmatprep.subr.mxu0 0.0
    %658 = vmatpush1.msra.mxu0 0.0
    %659 = vmatprep.subr.mxu0 0.0
    %660 = vmatpush1.msra.mxu0 0.0
    %661 = vmatprep.subr.mxu0 0.0
    %662 = vmatpush1.msra.mxu0 0.0
    %663 = vmatprep.subr.mxu0 0.0
    %664 = vmatpush1.msra.mxu0 0.0
    %665 = vmatprep.subr.mxu0 0.0
    %666 = vmatpush1.msra.mxu0 0.0
    %667 = vmatprep.subr.mxu0 0.0
    %668 = vmatpush1.msra.mxu0 0.0
    %669 = vmatprep.subr.mxu0 0.0
    %670 = vmatpush1.msra.mxu0 %v33
    %671 = vmatprep.subr.mxu0 0.0
    %672 = vmatpush1.msra.mxu0 %v32
    %673 = vmatprep.subr.mxu0 0.0
    %674 = vmatpush1.msra.mxu0 %v31
    %675 = vmatprep.subr.mxu0 0.0
    %676 = vmatpush1.msra.mxu0 %v30
    %677 = vmatprep.subr.mxu0 0.0
    %678 = vmatpush2.msra.mxu0 0.0
    %679 = vmatprep.subr.mxu0 0.0
    %680 = vmatpush2.msra.mxu0 0.0
    %681 = vmatprep.subr.mxu0 0.0
    %682 = vmatpush2.msra.mxu0 0.0
    %683 = vmatprep.subr.mxu0 0.0
    %684 = vmatpush2.msra.mxu0 0.0
    %685 = vmatprep.subr.mxu0 0.0
    %686 = vmatpush2.msra.mxu0 0.0
    %687 = vmatprep.subr.mxu0 0.0
    %688 = vmatpush2.msra.mxu0 0.0
    %689 = vmatprep.subr.mxu0 0.0
    %690 = vmatpush2.msra.mxu0 0.0
    %691 = vmatprep.subr.mxu0 0.0
    %692 = vmatpush2.msra.mxu0 0.0
    %693 = vmatprep.subr.mxu0 0.0
    %694 = vmatpush2.msra.mxu0 0.0
    %695 = vmatprep.subr.mxu0 0.0
    %696 = vmatpush2.msra.mxu0 0.0
    %697 = vmatprep.subr.mxu0 0.0
    %698 = vmatpush2.msra.mxu0 0.0
    %699 = vmatprep.subr.mxu0 0.0
    %700 = vmatpush2.msra.mxu0 0.0
    %701 = vmatprep.subr.mxu0 0.0
    %702 = vmatpush2.msra.mxu0 0.0
    %703 = vmatprep.subr.mxu0 0.0
    %704 = vmatpush2.msra.mxu0 0.0
    %705 = vmatprep.subr.mxu0 0.0
    %706 = vmatpush2.msra.mxu0 0.0
    %707 = vmatprep.subr.mxu0 0.0
    %708 = vmatpush2.msra.mxu0 0.0
    %709 = vmatprep.mubr.f32.mxu0 0.0
    %710 = vmatmul.mubr.f32.gmra.mxu0 %v643
    %v711 = vpop.f32.mrf.mxu0
    %v712 = vadd.f32 0.0, %v711
    %v713 = vpop.f32.mrf.mxu0
    %714 = vdwg.mxu0
    %v716 = vrot.slane %v712, 3
    %v718 = vadd.f32 %v110, %v716
    %v719 = vxor.u32 %v718, 2147483648
    %v720 = vmul.f32 %v719, 1.442695
    %v721 = vpow.pop %v720
    %v722 = vadd.f32 %v721, 1.0
    %v723 = vrcp.pop %v722
    %v724 = vmul.f32 1.0, %v723
    %v725 = vtanh.pop %v718
    %v727 = vrot.slane %v632, 7
    %v729 = vmul.f32 %v724, %v727
    %731 = vrot.lane.b32.xlu0 %v725, 64
    %v732 = vpop.permute.xlu0 %731
    %v734 = vmul.f32 %v724, %v732
    %736 = vrot.lane.b32.xlu0 %v734, 32
    %v737 = vpop.permute.xlu0 %736
    %v739 = vadd.f32 %v729, %v737
    %v740 = vtanh.pop %v739
    %742 = vrot.lane.b32.xlu0 %v740, 64
    %v743 = vpop.permute.xlu0 %742
    %v745 = vmul.f32 %v724, %v743
    %v747 = vrot.slane %v745, 5
    %748 = vrot.lane.b32.xlu0 %v747, 32
    %v749 = vpop.permute.xlu0 %748
    %v750 = vsel %vm113, %v749, 0
    %752 = vmatprep.subr.mxu0 0.0
    %753 = vmatpush1.msra.mxu0 0.0
    %754 = vmatprep.subr.mxu0 0.0
    %755 = vmatpush1.msra.mxu0 0.0
    %756 = vmatprep.subr.mxu0 0.0
    %757 = vmatpush1.msra.mxu0 0.0
    %758 = vmatprep.subr.mxu0 0.0
    %759 = vmatpush1.msra.mxu0 0.0
    %760 = vmatprep.subr.mxu0 0.0
    %761 = vmatpush1.msra.mxu0 0.0
    %762 = vmatprep.subr.mxu0 0.0
    %763 = vmatpush1.msra.mxu0 0.0
    %764 = vmatprep.subr.mxu0 0.0
    %765 = vmatpush1.msra.mxu0 0.0
    %766 = vmatprep.subr.mxu0 0.0
    %767 = vmatpush1.msra.mxu0 0.0
    %768 = vmatprep.subr.mxu0 0.0
    %769 = vmatpush1.msra.mxu0 0.0
    %770 = vmatprep.subr.mxu0 0.0
    %771 = vmatpush1.msra.mxu0 0.0
    %772 = vmatprep.subr.mxu0 0.0
    %773 = vmatpush1.msra.mxu0 0.0
    %774 = vmatprep.subr.mxu0 0.0
    %775 = vmatpush1.msra.mxu0 0.0
    %776 = vmatprep.subr.mxu0 0.0
    %777 = vmatpush1.msra.mxu0 %v33
    %778 = vmatprep.subr.mxu0 0.0
    %779 = vmatpush1.msra.mxu0 %v32
    %780 = vmatprep.subr.mxu0 0.0
    %781 = vmatpush1.msra.mxu0 %v31
    %782 = vmatprep.subr.mxu0 0.0
    %783 = vmatpush1.msra.mxu0 %v30
    %784 = vmatprep.subr.mxu0 0.0
    %785 = vmatpush2.msra.mxu0 0.0
    %786 = vmatprep.subr.mxu0 0.0
    %787 = vmatpush2.msra.mxu0 0.0
    %788 = vmatprep.subr.mxu0 0.0
    %789 = vmatpush2.msra.mxu0 0.0
    %790 = vmatprep.subr.mxu0 0.0
    %791 = vmatpush2.msra.mxu0 0.0
    %792 = vmatprep.subr.mxu0 0.0
    %793 = vmatpush2.msra.mxu0 0.0
    %794 = vmatprep.subr.mxu0 0.0
    %795 = vmatpush2.msra.mxu0 0.0
    %796 = vmatprep.subr.mxu0 0.0
    %797 = vmatpush2.msra.mxu0 0.0
    %798 = vmatprep.subr.mxu0 0.0
    %799 = vmatpush2.msra.mxu0 0.0
    %800 = vmatprep.subr.mxu0 0.0
    %801 = vmatpush2.msra.mxu0 0.0
    %802 = vmatprep.subr.mxu0 0.0
    %803 = vmatpush2.msra.mxu0 0.0
    %804 = vmatprep.subr.mxu0 0.0
    %805 = vmatpush2.msra.mxu0 0.0
    %806 = vmatprep.subr.mxu0 0.0
    %807 = vmatpush2.msra.mxu0 0.0
    %808 = vmatprep.subr.mxu0 0.0
    %809 = vmatpush2.msra.mxu0 0.0
    %810 = vmatprep.subr.mxu0 0.0
    %811 = vmatpush2.msra.mxu0 0.0
    %812 = vmatprep.subr.mxu0 0.0
    %813 = vmatpush2.msra.mxu0 0.0
    %814 = vmatprep.subr.mxu0 0.0
    %815 = vmatpush2.msra.mxu0 0.0
    %816 = vmatprep.mubr.f32.mxu0 0.0
    %817 = vmatmul.mubr.f32.gmra.mxu0 %v750
    %v818 = vpop.f32.mrf.mxu0
    %v819 = vadd.f32 0.0, %v818
    %v820 = vpop.f32.mrf.mxu0
    %821 = vdwg.mxu0
    %v823 = vrot.slane %v819, 2
    %v825 = vadd.f32 %v110, %v823
    %v826 = vxor.u32 %v825, 2147483648
    %v827 = vmul.f32 %v826, 1.442695
    %v828 = vpow.pop %v827
    %v829 = vadd.f32 %v828, 1.0
    %v830 = vrcp.pop %v829
    %v831 = vmul.f32 1.0, %v830
    %v832 = vtanh.pop %v825
    %v834 = vrot.slane %v739, 7
    %v836 = vmul.f32 %v831, %v834
    %838 = vrot.lane.b32.xlu0 %v832, 64
    %v839 = vpop.permute.xlu0 %838
    %v841 = vmul.f32 %v831, %v839
    %843 = vrot.lane.b32.xlu0 %v841, 32
    %v844 = vpop.permute.xlu0 %843
    %v846 = vadd.f32 %v836, %v844
    %v847 = vtanh.pop %v846
    %849 = vrot.lane.b32.xlu0 %v847, 64
    %v850 = vpop.permute.xlu0 %849
    %v852 = vmul.f32 %v831, %v850
    %v854 = vrot.slane %v852, 6
    %855 = vrot.lane.b32.xlu0 %v854, 32
    %v856 = vpop.permute.xlu0 %855
    %v857 = vsel %vm113, %v856, 0
    %859 = vmatprep.subr.mxu0 0.0
    %860 = vmatpush1.msra.mxu0 0.0
    %861 = vmatprep.subr.mxu0 0.0
    %862 = vmatpush1.msra.mxu0 0.0
    %863 = vmatprep.subr.mxu0 0.0
    %864 = vmatpush1.msra.mxu0 0.0
    %865 = vmatprep.subr.mxu0 0.0
    %866 = vmatpush1.msra.mxu0 0.0
    %867 = vmatprep.subr.mxu0 0.0
    %868 = vmatpush1.msra.mxu0 0.0
    %869 = vmatprep.subr.mxu0 0.0
    %870 = vmatpush1.msra.mxu0 0.0
    %871 = vmatprep.subr.mxu0 0.0
    %872 = vmatpush1.msra.mxu0 0.0
    %873 = vmatprep.subr.mxu0 0.0
    %874 = vmatpush1.msra.mxu0 0.0
    %875 = vmatprep.subr.mxu0 0.0
    %876 = vmatpush1.msra.mxu0 0.0
    %877 = vmatprep.subr.mxu0 0.0
    %878 = vmatpush1.msra.mxu0 0.0
    %879 = vmatprep.subr.mxu0 0.0
    %880 = vmatpush1.msra.mxu0 0.0
    %881 = vmatprep.subr.mxu0 0.0
    %882 = vmatpush1.msra.mxu0 0.0
    %883 = vmatprep.subr.mxu0 0.0
    %884 = vmatpush1.msra.mxu0 %v33
    %885 = vmatprep.subr.mxu0 0.0
    %886 = vmatpush1.msra.mxu0 %v32
    %887 = vmatprep.subr.mxu0 0.0
    %888 = vmatpush1.msra.mxu0 %v31
    %889 = vmatprep.subr.mxu0 0.0
    %890 = vmatpush1.msra.mxu0 %v30
    %891 = vmatprep.subr.mxu0 0.0
    %892 = vmatpush2.msra.mxu0 0.0
    %893 = vmatprep.subr.mxu0 0.0
    %894 = vmatpush2.msra.mxu0 0.0
    %895 = vmatprep.subr.mxu0 0.0
    %896 = vmatpush2.msra.mxu0 0.0
    %897 = vmatprep.subr.mxu0 0.0
    %898 = vmatpush2.msra.mxu0 0.0
    %899 = vmatprep.subr.mxu0 0.0
    %900 = vmatpush2.msra.mxu0 0.0
    %901 = vmatprep.subr.mxu0 0.0
    %902 = vmatpush2.msra.mxu0 0.0
    %903 = vmatprep.subr.mxu0 0.0
    %904 = vmatpush2.msra.mxu0 0.0
    %905 = vmatprep.subr.mxu0 0.0
    %906 = vmatpush2.msra.mxu0 0.0
    %907 = vmatprep.subr.mxu0 0.0
    %908 = vmatpush2.msra.mxu0 0.0
    %909 = vmatprep.subr.mxu0 0.0
    %910 = vmatpush2.msra.mxu0 0.0
    %911 = vmatprep.subr.mxu0 0.0
    %912 = vmatpush2.msra.mxu0 0.0
    %913 = vmatprep.subr.mxu0 0.0
    %914 = vmatpush2.msra.mxu0 0.0
    %915 = vmatprep.subr.mxu0 0.0
    %916 = vmatpush2.msra.mxu0 0.0
    %917 = vmatprep.subr.mxu0 0.0
    %918 = vmatpush2.msra.mxu0 0.0
    %919 = vmatprep.subr.mxu0 0.0
    %920 = vmatpush2.msra.mxu0 0.0
    %921 = vmatprep.subr.mxu0 0.0
    %922 = vmatpush2.msra.mxu0 0.0
    %923 = vmatprep.mubr.f32.mxu0 0.0
    %924 = vmatmul.mubr.f32.gmra.mxu0 %v857
    %v925 = vpop.f32.mrf.mxu0
    %v926 = vadd.f32 0.0, %v925
    %v927 = vpop.f32.mrf.mxu0
    %928 = vdwg.mxu0
    %v930 = vrot.slane %v926, 1
    %v932 = vadd.f32 %v110, %v930
    %v933 = vxor.u32 %v932, 2147483648
    %v934 = vmul.f32 %v933, 1.442695
    %v935 = vpow.pop %v934
    %v936 = vadd.f32 %v935, 1.0
    %v937 = vrcp.pop %v936
    %v938 = vmul.f32 1.0, %v937
    %v939 = vtanh.pop %v932
    %v941 = vrot.slane %v846, 7
    %v943 = vmul.f32 %v938, %v941
    %945 = vrot.lane.b32.xlu0 %v939, 64
    %v946 = vpop.permute.xlu0 %945
    %v948 = vmul.f32 %v938, %v946
    %950 = vrot.lane.b32.xlu0 %v948, 32
    %v951 = vpop.permute.xlu0 %950
    %v953 = vadd.f32 %v943, %v951
    %v954 = vtanh.pop %v953
    %956 = vrot.lane.b32.xlu0 %v954, 64
    %v957 = vpop.permute.xlu0 %956
    %v959 = vmul.f32 %v938, %v957
    %vm960 = vcmask 1040384
    %v961 = vsel %vm960, %v211, %v317
    %vm962 = vcmask 1041408
    %v963 = vsel %vm962, %v961, %v424
    %vm964 = vcmask 1042432
    %v965 = vsel %vm964, %v963, %v531
    %vm966 = vcmask 1043456
    %v967 = vsel %vm966, %v965, %v638
    %vm968 = vcmask 1044480
    %v969 = vsel %vm968, %v967, %v745
    %vm970 = vcmask 1045504
    %v971 = vsel %vm970, %v969, %v852
    %vm972 = vcmask 1046528
    %v973 = vsel %vm972, %v971, %v959
    %975 = vrot.lane.b32.xlu0 %v973, 32
    %v976 = vpop.permute.xlu0 %975
    %978 = vrot.lane.b32.xlu0 %v27, 16
    %v979 = vpop.permute.xlu0 %978
    %v981 = vsel %vm113, %v976, %v979
    %v982 = vld [vmem:[%s2] sm:$0xff]
    %v983 = vld [vmem:[%s2 + $0x8] sm:$0xff]
    %v984 = vld [vmem:[%s2 + $0x10] sm:$0xff]
    %v985 = vld [vmem:[%s2 + $0x18] sm:$0xff]
    %v986 = vld [vmem:[%s2 + $0x20] sm:$0xff]
    %v987 = vld [vmem:[%s2 + $0x28] sm:$0x1]
    %v988 = vlaneseq
    %v989 = vshrl.u32 %v988, 7
    %v990 = vsub.s32 0, %v989
    %v991 = vrot.slane %v987, %v990
    %vm992 = vcmask 326656
    %v994 = vsel %vm992, %v981, 0
    %996 = vmatprep.subr.mxu0 0.0
    %997 = vmatpush1.msra.mxu0 0.0
    %998 = vmatprep.subr.mxu0 0.0
    %999 = vmatpush1.msra.mxu0 0.0
    %1000 = vmatprep.subr.mxu0 0.0
    %1001 = vmatpush1.msra.mxu0 0.0
    %1002 = vmatprep.subr.mxu0 0.0
    %1003 = vmatpush1.msra.mxu0 0.0
    %1004 = vmatprep.subr.mxu0 0.0
    %1005 = vmatpush1.msra.mxu0 0.0
    %1006 = vmatprep.subr.mxu0 0.0
    %1007 = vmatpush1.msra.mxu0 0.0
    %1008 = vmatprep.subr.mxu0 0.0
    %1009 = vmatpush1.msra.mxu0 0.0
    %1010 = vmatprep.subr.mxu0 0.0
    %1011 = vmatpush1.msra.mxu0 0.0
    %1012 = vmatprep.subr.mxu0 0.0
    %1013 = vmatpush1.msra.mxu0 0.0
    %1014 = vmatprep.subr.mxu0 0.0
    %1015 = vmatpush1.msra.mxu0 0.0
    %1016 = vmatprep.subr.mxu0 0.0
    %1017 = vmatpush1.msra.mxu0 0.0
    %1018 = vmatprep.subr.mxu0 0.0
    %1019 = vmatpush1.msra.mxu0 %v986
    %1020 = vmatprep.subr.mxu0 0.0
    %1021 = vmatpush1.msra.mxu0 %v985
    %1022 = vmatprep.subr.mxu0 0.0
    %1023 = vmatpush1.msra.mxu0 %v984
    %1024 = vmatprep.subr.mxu0 0.0
    %1025 = vmatpush1.msra.mxu0 %v983
    %1026 = vmatprep.subr.mxu0 0.0
    %1027 = vmatpush1.msra.mxu0 %v982
    %1028 = vmatprep.subr.mxu0 0.0
    %1029 = vmatpush2.msra.mxu0 0.0
    %1030 = vmatprep.subr.mxu0 0.0
    %1031 = vmatpush2.msra.mxu0 0.0
    %1032 = vmatprep.subr.mxu0 0.0
    %1033 = vmatpush2.msra.mxu0 0.0
    %1034 = vmatprep.subr.mxu0 0.0
    %1035 = vmatpush2.msra.mxu0 0.0
    %1036 = vmatprep.subr.mxu0 0.0
    %1037 = vmatpush2.msra.mxu0 0.0
    %1038 = vmatprep.subr.mxu0 0.0
    %1039 = vmatpush2.msra.mxu0 0.0
    %1040 = vmatprep.subr.mxu0 0.0
    %1041 = vmatpush2.msra.mxu0 0.0
    %1042 = vmatprep.subr.mxu0 0.0
    %1043 = vmatpush2.msra.mxu0 0.0
    %1044 = vmatprep.subr.mxu0 0.0
    %1045 = vmatpush2.msra.mxu0 0.0
    %1046 = vmatprep.subr.mxu0 0.0
    %1047 = vmatpush2.msra.mxu0 0.0
    %1048 = vmatprep.subr.mxu0 0.0
    %1049 = vmatpush2.msra.mxu0 0.0
    %1050 = vmatprep.subr.mxu0 0.0
    %1051 = vmatpush2.msra.mxu0 0.0
    %1052 = vmatprep.subr.mxu0 0.0
    %1053 = vmatpush2.msra.mxu0 0.0
    %1054 = vmatprep.subr.mxu0 0.0
    %1055 = vmatpush2.msra.mxu0 0.0
    %1056 = vmatprep.subr.mxu0 0.0
    %1057 = vmatpush2.msra.mxu0 0.0
    %1058 = vmatprep.subr.mxu0 0.0
    %1059 = vmatpush2.msra.mxu0 0.0
    %1060 = vmatprep.mubr.f32.mxu0 0.0
    %1061 = vmatmul.mubr.f32.gmra.mxu0 %v994
    %v1062 = vpop.f32.mrf.mxu0
    %v1063 = vadd.f32 %v991, %v1062
    %v1064 = vpop.f32.mrf.mxu0
    %1065 = vdwg.mxu0
    %vm1066 = vcmask 64512
    %v1067 = vsel %vm1066, %v1063, -inf
    %1068 = vmax.xlane.f32.xlu0 %v1067
    %v1069 = vpop.xlane.xlu0 %1068
    %v1070 = vsub.f32 %v1063, %v1069
    %v1071 = vmul.f32 %v1070, 1.442695
    %v1072 = vpow.pop %v1071
    %v1073 = vsel %vm1066, %v1072, 0.0
    %1074 = vadd.xlane.f32.xlu0 %v1073
    %v1075 = vpop.xlane.xlu0 %1074
    %v1076 = vlog2.pop %v1075
    %v1077 = vmul.f32 %v1076, 0.6931472
    %v1078 = vsub.f32 %v1070, %v1077
    %1079 = vst.msk [vmem:[#allocation5] sm:$0xff] %vm1066, %v1078
    // Predicated region
    $region18: #{tpu_custom_call.1} parent=1 // pred_check
      _
    $region19: #{tpu_custom_call.1} parent=1 // pred_check_branch
      %1081 = sbr.rel (0) target = $region21
    $region20: #{tpu_custom_call.1} parent=1 // pred_region
      %s1083 = ssub.s32 128, 128
      %1084 = vsyncadd [#allocation4], %s1083
      %s1086 = sshll.u32 [#allocation5], 4
      %s1087 = int_to_ptr.vmem [resolvable:$true] %s1086
      %1089 = dma.vmem_to_hbm [thread:$0]  %s1087, 128, %s3, [#allocation4]
    $region21: #{tpu_custom_call.1} parent=1 // pred_fallthru
      _
    // Predicated region
    $region22: #{tpu_custom_call.1} parent=1 // pred_check
      _
    $region23: #{tpu_custom_call.1} parent=1 // pred_check_branch
      %1091 = sbr.rel (0) target = $region25
    $region24: #{tpu_custom_call.1} parent=1 // pred_region
      %1092 = dma.done [#allocation4], 128
    $region25: #{tpu_custom_call.1} parent=1 // pred_fallthru
      _
    %1093 = vsyncpa [#allocation3], 1
    %1094 = vsyncpa [#allocation4], 1

</llo_original>
